<compile_context>
chip_gen: v7x
topology: tpu7x:2x2x1
jax: 0.10.0
libtpu: 0.0.40
codegen_flags: <defaults>
</compile_context>

<pallas_src>
import functools

import jax
import jax.numpy as jnp
from jax.experimental import pallas as pl
from jax.experimental.pallas import tpu as pltpu


def _embed_kernel(x_ref, w_ref, pos_ref, o_ref):
    """One grid step = tb batch elements, fused into a single matmul.

    x_ref  : (tb*rows_pad, k) bf16  patchified input (zero cls rows / pad rows)
    w_ref  : (k, d)           bf16  weight, k ordered (c, h2, w2), transposed
    pos_ref: (tb*rows_pad, d) f32   positional embedding tiled per block
                                    (cls folded into row 0 of each element)
    o_ref  : (tb*rows_pad, d)       output
    """
    emb = jnp.dot(x_ref[...], w_ref[...], preferred_element_type=jnp.float32)
    o_ref[...] = (emb + pos_ref[...]).astype(o_ref.dtype)


def _vmem_budget(frac=0.65):
    """Generation-aware VMEM budget (bytes)."""
    cap_bytes = 64 * 2 ** 20  # conservative fallback: v7x physical VMEM per TC
    try:
        cap_bytes = int(pltpu.get_tpu_info().vmem_capacity_bytes)
    except Exception:
        pass
    return int(cap_bytes * frac)


def _pick_tb(batch, rows_pad, k, d, in_bytes, out_bytes, vmem_budget):
    """Largest divisor of `batch` whose (double-buffered) blocks fit the budget,
    preferring an even grid-step count (v7x megacore load balance)."""
    fixed = 2 * k * d * in_bytes                      # weight (double-buffered)
    per_tb = (2 * rows_pad * k * in_bytes             # x block
              + 2 * rows_pad * d * out_bytes          # out block
              + 2 * rows_pad * d * 4)                 # tiled pos block (f32)
    cap = max(1, (vmem_budget - fixed) // per_tb)
    divisors = [t for t in range(1, batch + 1) if batch % t == 0 and t <= cap]
    if not divisors:
        return 1
    even_steps = [t for t in divisors if (batch // t) % 2 == 0]
    if even_steps:
        return max(even_steps)            # fewest (even) steps
    multi_steps = [t for t in divisors if batch // t >= 2]
    if multi_steps:
        return max(multi_steps)
    return max(divisors)


def embed_forward(x, weight, cls, pos, p, out_dtype=jnp.bfloat16):
    """JAX wrapper reproducing Embed.forward (dropout rate 0).

    x      : (B, C, H, W) float32, H = h1*p, W = w1*p
    weight : (d, c*p*p)   PyTorch nn.Linear weight layout, k ordered (h2, w2, c)
    cls    : (d,)
    pos    : (n+1, d) where n = (H//p) * (W//p)
    """
    B, C, H, W = x.shape
    h1, w1 = H // p, W // p
    n = h1 * w1
    k = C * p * p
    d = weight.shape[0]
    rows = n + 1
    rows_pad = ((rows + 15) // 16) * 16   # bf16 sublane tile multiple

    # Cast to bf16 BEFORE the relayout (halves the bytes the transpose writes),
    # patchify with channel-contiguous feature order (c, h2, w2), then ONE pad
    # that adds the leading zero "cls" row plus the trailing alignment rows.
    xp = x.astype(jnp.bfloat16).reshape(B, C, h1, p, w1, p)
    xp = jnp.transpose(xp, (0, 2, 4, 1, 3, 5)).reshape(B, n, k)
    xp = jnp.pad(xp, ((0, 0), (1, rows_pad - rows), (0, 0)))
    xp = xp.reshape(B * rows_pad, k)      # layout-free: rows_pad % 16 == 0

    # Permute the weight's k axis from (h2, w2, c) to (c, h2, w2), transpose to
    # (k, d).  Same dot-product terms, different order -> math unchanged.
    w_t = weight.reshape(d, p, p, C).transpose(3, 1, 2, 0).reshape(k, d)
    w_t = w_t.astype(jnp.bfloat16)

    # Fold cls into the first positional row (f32), pad rows to rows_pad.
    pos_eff = pos.astype(jnp.float32).at[0].add(cls.astype(jnp.float32))
    pos_pad = jnp.pad(pos_eff, ((0, rows_pad - rows), (0, 0)))

    in_bytes = 2
    out_bytes = jnp.dtype(out_dtype).itemsize
    budget = _vmem_budget()
    tb = _pick_tb(B, rows_pad, k, d, in_bytes, out_bytes, budget)

    # Tile pos once to the per-step block shape -> kernel body needs no
    # broadcast/reshape; this block is constant across the grid.
    pos_tiled = jnp.tile(pos_pad, (tb, 1))            # (tb*rows_pad, d)

    out = pl.pallas_call(
        _embed_kernel,
        out_shape=jax.ShapeDtypeStruct((B * rows_pad, d), out_dtype),
        grid_spec=pltpu.PrefetchScalarGridSpec(
            num_scalar_prefetch=0,
            grid=(B // tb,),
            in_specs=[
                pl.BlockSpec((tb * rows_pad, k), lambda b: (b, 0)),
                pl.BlockSpec((k, d), lambda b: (0, 0)),
                pl.BlockSpec((tb * rows_pad, d), lambda b: (0, 0)),
            ],
            out_specs=pl.BlockSpec((tb * rows_pad, d), lambda b: (b, 0)),
        ),
        compiler_params=pltpu.CompilerParams(
            dimension_semantics=("parallel",),
            vmem_limit_bytes=budget,
            # Let XLA fuse the patchify chain into the pallas input (x only).
            allow_input_fusion=[True, False, False],
        ),
    )(xp, w_t, pos_tiled)

    # Drop the alignment rows; reshape is free (just splits the leading dim).
    return out.reshape(B, rows_pad, d)[:, :rows, :]


def reference_forward(x, weight, cls, pos, p, cast_dtype=None):
    """Pure-JAX reference identical to the PyTorch forward (dropout=0).

    Uses the original einops feature order (h2, w2, c) and the original weight,
    so it also validates the k-axis permutation done in the wrapper.
    """
    B, C, H, W = x.shape
    h1, w1 = H // p, W // p
    n = h1 * w1
    xp = x.reshape(B, C, h1, p, w1, p)
    xp = jnp.transpose(xp, (0, 2, 4, 3, 5, 1)).reshape(B, n, C * p * p)
    w = weight
    if cast_dtype is not None:
        xp = xp.astype(cast_dtype)
        w = w.astype(cast_dtype)
    emb = jnp.einsum("bnk,dk->bnd", xp, w, preferred_element_type=jnp.float32)
    cls_b = jnp.broadcast_to(cls.reshape(1, 1, -1), (B, 1, weight.shape[0]))
    out = jnp.concatenate([cls_b, emb.astype(jnp.float32)], axis=1)
    return out + pos[None, :, :]


if __name__ == "__main__":
    # Small shapes consistent with the module: d=32, p=4, c=3, spatial 16x16
    # -> n = (16/4)*(16/4) = 16 patches, k = c*p^2 = 48.
    B, C, Hs, Ws = 2, 3, 16, 16
    p = 4
    d = 32
    n = (Hs // p) * (Ws // p)
    k = C * p * p

    key = jax.random.PRNGKey(0)
    kx, kw, kc, kp = jax.random.split(key, 4)
    x = jax.random.normal(kx, (B, C, Hs, Ws), dtype=jnp.float32)
    weight = jax.random.normal(kw, (d, k), dtype=jnp.float32) * (1.0 / (k ** 0.5))
    cls = jax.random.normal(kc, (d,), dtype=jnp.float32)
    pos = jax.random.normal(kp, (n + 1, d), dtype=jnp.float32)

    # Default path: bf16 output (f32 accumulate inside the kernel).
    fwd_bf16 = jax.jit(functools.partial(embed_forward, p=p))
    out_bf16 = jax.block_until_ready(fwd_bf16(x, weight, cls, pos))
    assert out_bf16.shape == (B, n + 1, d), out_bf16.shape

    # f32-output path for a tight numerical check.
    fwd_f32 = jax.jit(functools.partial(embed_forward, p=p, out_dtype=jnp.float32))
    out_f32 = jax.block_until_ready(fwd_f32(x, weight, cls, pos))
    assert out_f32.shape == (B, n + 1, d), out_f32.shape

    ref_bf16 = reference_forward(x, weight, cls, pos, p, cast_dtype=jnp.bfloat16)
    ref_f32 = reference_forward(x, weight, cls, pos, p)

    # f32 output vs bf16-matched reference: only MXU accumulation-order noise.
    assert jnp.allclose(out_f32, ref_bf16, atol=2e-3, rtol=2e-3), \
        "f32-out mismatch vs bf16-matched reference"
    # bf16 output: add output-rounding tolerance.
    assert jnp.allclose(out_bf16.astype(jnp.float32), ref_bf16, atol=4e-2, rtol=2e-2), \
        "bf16-out mismatch vs bf16-matched reference"
    # Looser checks against the full-f32 reference (bf16 input rounding only).
    assert jnp.allclose(out_f32, ref_f32, atol=5e-2, rtol=5e-2), \
        "f32-out mismatch vs f32 reference"
    assert jnp.allclose(out_bf16.astype(jnp.float32), ref_f32, atol=1e-1, rtol=5e-2), \
        "bf16-out mismatch vs f32 reference"

    print("KERNEL_OK")
</pallas_src>

<mosaic_0001>
module attributes {stable_mosaic.version = 11 : i64} {
  func.func @_embed_kernel(%arg0: i32, %arg1: memref<32x48xbf16, #tpu.memory_space<vmem>>, %arg2: memref<48x32xbf16, #tpu.memory_space<vmem>>, %arg3: memref<32x32xf32, #tpu.memory_space<vmem>>, %arg4: memref<32x32xbf16, #tpu.memory_space<vmem>>) attributes {dimension_semantics = [#tpu.dimension_semantics<parallel>], iteration_bounds = array<i64: 2>, scalar_prefetch = 0 : i64, scratch_operands = 0 : i64, tpu.core_type = #tpu.core_type<tc>, window_params = [{transform_indices = @transform_0, window_bounds = array<i64: 32, 48>}, {pipeline_mode = #tpu.pipeline_mode<synchronous>, transform_indices = @transform_1, window_bounds = array<i64: 48, 32>}, {pipeline_mode = #tpu.pipeline_mode<synchronous>, transform_indices = @transform_2, window_bounds = array<i64: 32, 32>}, {transform_indices = @transform_3, window_bounds = array<i64: 32, 32>}]} {
    %c0 = arith.constant 0 : index
    %c0_0 = arith.constant 0 : index
    %0 = vector.load %arg1[%c0, %c0_0] : memref<32x48xbf16, #tpu.memory_space<vmem>>, vector<32x48xbf16>
    %c0_1 = arith.constant 0 : index
    %c0_2 = arith.constant 0 : index
    %1 = vector.load %arg2[%c0_1, %c0_2] : memref<48x32xbf16, #tpu.memory_space<vmem>>, vector<48x32xbf16>
    %cst = arith.constant dense<0.000000e+00> : vector<32x32xf32>
    %2 = tpu.matmul %0, %1, %cst {dimension_numbers = #tpu.dot_dimension_numbers<[1], [0], [0], [1], [0, 0, 1, 1], [], []>} : vector<32x48xbf16>, vector<48x32xbf16>, vector<32x32xf32> -> vector<32x32xf32>
    %c0_3 = arith.constant 0 : index
    %c0_4 = arith.constant 0 : index
    %3 = vector.load %arg3[%c0_3, %c0_4] : memref<32x32xf32, #tpu.memory_space<vmem>>, vector<32x32xf32>
    %4 = arith.addf %2, %3 : vector<32x32xf32>
    %5 = arith.truncf %4 : vector<32x32xf32> to vector<32x32xbf16>
    %c0_5 = arith.constant 0 : index
    %c0_6 = arith.constant 0 : index
    %6 = vector.load %arg4[%c0_5, %c0_6] : memref<32x32xbf16, #tpu.memory_space<vmem>>, vector<32x32xbf16>
    tpu.vector_store %arg4[%c0_5, %c0_6], %5 {strides = array<i32>} : memref<32x32xbf16, #tpu.memory_space<vmem>>, vector<32x32xbf16>,
    return
  }
  func.func @transform_0(%arg0: i32) -> (i32, i32) {
    %c0_i32 = arith.constant 0 : i32
    %c0_i32_0 = arith.constant 0 : i32
    return %arg0, %c0_i32 : i32, i32
  }
  func.func @transform_1(%arg0: i32) -> (i32, i32) {
    %c0_i32 = arith.constant 0 : i32
    %c0_i32_0 = arith.constant 0 : i32
    %c0_i32_1 = arith.constant 0 : i32
    return %c0_i32, %c0_i32_0 : i32, i32
  }
  func.func @transform_2(%arg0: i32) -> (i32, i32) {
    %c0_i32 = arith.constant 0 : i32
    %c0_i32_0 = arith.constant 0 : i32
    %c0_i32_1 = arith.constant 0 : i32
    return %c0_i32, %c0_i32_0 : i32, i32
  }
  func.func @transform_3(%arg0: i32) -> (i32, i32) {
    %c0_i32 = arith.constant 0 : i32
    %c0_i32_0 = arith.constant 0 : i32
    return %arg0, %c0_i32 : i32, i32
  }
}

</mosaic_0001>

<llo_original>
// kernel: embed_forward.1
$region0: #{embed_forward.1}
  #allocation0 [shape = 'u32[]', space=smem, size = 0x4, offset = 0x4, fixed_abs, tag = 'smem constant byte address 0x4 - core index']
  #allocation1 [shape = 'u32[144,128]{1,0:T(1,128)}', space=vmem, size = 0x12000, scoped, tag = 'internal scratch']
  %s0 = inlined_call_operand.vmem [shape: bf16[64,48], index: 0, kind: input, shape index: {}]
  %s1 = inlined_call_operand.vmem [shape: bf16[48,32], index: 1, kind: input, shape index: {}]
  %s2 = inlined_call_operand.vmem [shape: f32[32,32], index: 2, kind: input, shape index: {}]
  %s3 = inlined_call_operand.vmem [shape: bf16[64,32], index: 3, kind: output, shape index: {}]
  %s4 = sld [smem:[#allocation0]]
  $region45: #{embed_forward.1} parent=0
    _
  %s6 = ssub.s32 1, %s4
  %s7 = scalar_select 0, %s6, %s4
  loop: start=0, step=1, limit=4
  $region2: #{embed_forward.1} parent=0 // loop_pre_header
    _
  $region3: #{embed_forward.1} parent=0 // loop_header
    %s9 = sphi 0, %s13
    %p10 = scmp.ge.s32.totalorder %s9, 4
    %s19 = sphi 0, %s21
    %s22 = sphi 0, %s19
    %s23 = sphi 0, %s22
    %s39 = sphi 0, %s23
    %s43 = sphi 0, %s43
    %s45 = sphi 0, %s43
    %s46 = sphi 0, %s45
    %s60 = sphi 0, %s46
    %s64 = sphi 0, %s64
    %s66 = sphi 0, %s64
    %s67 = sphi 0, %s66
    %s81 = sphi 0, %s67
    %s87 = sphi 0, %s89
    %s90 = sphi 0, %s87
    %s91 = sphi 0, %s90
    %s107 = sphi 0, %s91
  $region4: #{embed_forward.1} parent=0 // loop_header_branch
    %12 = sbr.rel (%p10) target = $region8
  $region5: #{embed_forward.1} parent=0 // loop_body
    %s14 = ssub.s32 %s9, 1
    %s15 = ssub.s32 %s9, 2
    %s16 = sadd.s32 %s9, 1
    %s17 = ssub.s32 %s9, %s16
    %p18 = scmp.eq.s32.totalorder %s17, 0
    %s20 = sadd.s32 %s19, 1
    %s21 = scalar_select %p18, %s19, %s20
    %p24 = pneg %p18
    %p25 = scmp.eq.s32.totalorder %s9, 1
    %p26 = por %p24, %p25
    %p27 = scmp.ne.s32.totalorder %s19, %s22
    %p28 = scmp.eq.s32.totalorder %s9, 0
    %p29 = por %p27, %p28
    %p30 = scmp.ne.s32.totalorder %s19, %s22
    %p31 = scmp.eq.s32.totalorder %s14, 1
    %p32 = por %p30, %p31
    %p33 = scmp.ne.s32.totalorder %s22, %s23
    %p34 = scmp.eq.s32.totalorder %s14, 0
    %p35 = por %p33, %p34
    %p36 = scmp.ne.s32.totalorder %s22, %s23
    %p37 = scmp.eq.s32.totalorder %s15, 1
    %p38 = por %p36, %p37
    %p40 = scmp.ne.s32.totalorder %s23, %s39
    %p41 = scmp.eq.s32.totalorder %s15, 0
    %p42 = por %p40, %p41
    %s44 = sadd.s32 %s43, 1
    %p47 = scmp.eq.s32.totalorder %s9, 1
    %p48 = scmp.ne.s32.totalorder %s43, %s45
    %p49 = scmp.eq.s32.totalorder %s9, 0
    %p50 = por %p48, %p49
    %p51 = scmp.ne.s32.totalorder %s43, %s45
    %p52 = scmp.eq.s32.totalorder %s14, 1
    %p53 = por %p51, %p52
    %p54 = scmp.ne.s32.totalorder %s45, %s46
    %p55 = scmp.eq.s32.totalorder %s14, 0
    %p56 = por %p54, %p55
    %p57 = scmp.ne.s32.totalorder %s45, %s46
    %p58 = scmp.eq.s32.totalorder %s15, 1
    %p59 = por %p57, %p58
    %p61 = scmp.ne.s32.totalorder %s46, %s60
    %p62 = scmp.eq.s32.totalorder %s15, 0
    %p63 = por %p61, %p62
    %s65 = sadd.s32 %s64, 1
    %p68 = scmp.eq.s32.totalorder %s9, 1
    %p69 = scmp.ne.s32.totalorder %s64, %s66
    %p70 = scmp.eq.s32.totalorder %s9, 0
    %p71 = por %p69, %p70
    %p72 = scmp.ne.s32.totalorder %s64, %s66
    %p73 = scmp.eq.s32.totalorder %s14, 1
    %p74 = por %p72, %p73
    %p75 = scmp.ne.s32.totalorder %s66, %s67
    %p76 = scmp.eq.s32.totalorder %s14, 0
    %p77 = por %p75, %p76
    %p78 = scmp.ne.s32.totalorder %s66, %s67
    %p79 = scmp.eq.s32.totalorder %s15, 1
    %p80 = por %p78, %p79
    %p82 = scmp.ne.s32.totalorder %s67, %s81
    %p83 = scmp.eq.s32.totalorder %s15, 0
    %p84 = por %p82, %p83
    %s85 = ssub.s32 %s9, %s16
    %p86 = scmp.eq.s32.totalorder %s85, 0
    %s88 = sadd.s32 %s87, 1
    %s89 = scalar_select %p86, %s87, %s88
    %p92 = pneg %p86
    %p93 = scmp.eq.s32.totalorder %s9, 1
    %p94 = por %p92, %p93
    %p95 = scmp.ne.s32.totalorder %s87, %s90
    %p96 = scmp.eq.s32.totalorder %s9, 0
    %p97 = por %p95, %p96
    %p98 = scmp.ne.s32.totalorder %s87, %s90
    %p99 = scmp.eq.s32.totalorder %s14, 1
    %p100 = por %p98, %p99
    %p101 = scmp.ne.s32.totalorder %s90, %s91
    %p102 = scmp.eq.s32.totalorder %s14, 0
    %p103 = por %p101, %p102
    %p104 = scmp.ne.s32.totalorder %s90, %s91
    %p105 = scmp.eq.s32.totalorder %s15, 1
    %p106 = por %p104, %p105
    %p108 = scmp.ne.s32.totalorder %s91, %s107
    %p109 = scmp.eq.s32.totalorder %s15, 0
    %p110 = por %p108, %p109
    %p111 = scmp.le.s32.totalorder 1, %s9
    %p112 = scmp.lt.s32.totalorder %s9, 3
    %p113 = pnand %p111, %p112
    %p114 = pneg %p113
    // Predicated region
    $region9: #{embed_forward.1} parent=5 // pred_check
      _
    $region10: #{embed_forward.1} parent=5 // pred_check_branch
      %116 = sbr.rel (%p113) target = $region12
    $region11: #{embed_forward.1} parent=5 // pred_region
      %s117 = ssub.s32 %s9, 1
      // Predicated region
      $region13: #{embed_forward.1} parent=11 // pred_check
        %p118 = pneg %p56
      $region14: #{embed_forward.1} parent=11 // pred_check_branch
        %120 = sbr.rel (%p118) target = $region16
      $region15: #{embed_forward.1} parent=11 // pred_region
        _
      $region16: #{embed_forward.1} parent=11 // pred_fallthru
        _
      // Predicated region
      $region17: #{embed_forward.1} parent=11 // pred_check
        %p121 = pneg %p77
      $region18: #{embed_forward.1} parent=11 // pred_check_branch
        %123 = sbr.rel (%p121) target = $region20
      $region19: #{embed_forward.1} parent=11 // pred_region
        _
      $region20: #{embed_forward.1} parent=11 // pred_fallthru
        _
    $region12: #{embed_forward.1} parent=5 // pred_fallthru
      _
    %p124 = scmp.lt.s32.totalorder %s9, 2
    // Predicated region
    $region21: #{embed_forward.1} parent=5 // pred_check
      %p125 = pneg %p124
    $region22: #{embed_forward.1} parent=5 // pred_check_branch
      %127 = sbr.rel (%p125) target = $region24
    $region23: #{embed_forward.1} parent=5 // pred_region
      // Predicated region
      $region25: #{embed_forward.1} parent=23 // pred_check
        %p128 = pneg %p29
      $region26: #{embed_forward.1} parent=23 // pred_check_branch
        %130 = sbr.rel (%p128) target = $region28
      $region27: #{embed_forward.1} parent=23 // pred_region
        %s131 = smul.u32 4, %s9
        %p132 = scmp.lt.s32.totalorder %s131, 7
        %s133 = scalar_select %p132, %s131, 7
        %s134 = smul.addr %s133, 4
        %s135 = scalar_lea.vmem %s0, %s134
        %s136 = smul.u32 4, %s9
      $region28: #{embed_forward.1} parent=23 // pred_fallthru
        _
    $region24: #{embed_forward.1} parent=5 // pred_fallthru
      _
    %p137 = scmp.le.s32.totalorder 1, %s9
    %p138 = scmp.lt.s32.totalorder %s9, 3
    %p139 = pnand %p137, %p138
    %p140 = pneg %p139
    // Predicated region
    $region29: #{embed_forward.1} parent=5 // pred_check
      _
    $region30: #{embed_forward.1} parent=5 // pred_check_branch
      %142 = sbr.rel (%p139) target = $region32
    $region31: #{embed_forward.1} parent=5 // pred_region
      %s143 = ssub.s32 %s9, 1
      %s144 = smul.u32 4, %s14
      %p145 = scmp.lt.s32.totalorder %s144, 7
      %s146 = scalar_select %p145, %s144, 7
      %s147 = smul.addr %s146, 4
      %s148 = scalar_lea.vmem %s0, %s147
      %p149 = pneg %p35
      %p150 = pneg %p32
      %p151 = pneg %p56
      %p152 = pneg %p53
      %p153 = pneg %p77
      %p154 = pneg %p74
      %p155 = pneg %p103
      %p156 = pneg %p100
      %s157 = smul.u32 4, %s14
      %p158 = scmp.lt.s32.totalorder %s157, 7
      %s159 = scalar_select %p158, %s157, 7
      %s160 = smul.addr %s159, 4
      %s161 = scalar_lea.vmem %s3, %s160
      %s162 = smul.u32 4, %s14
      %p163 = scmp.lt.s32.totalorder %s162, 7
      %s164 = scalar_select %p163, %s162, 7
      %s165 = smul.addr %s164, 4
      %s166 = scalar_lea.vmem %s0, %s165
      %s167 = smul.u32 4, %s14
      %s168 = smul.u32 4, %s14
      %p169 = scmp.lt.s32.totalorder %s168, 7
      %s170 = scalar_select %p169, %s168, 7
      %s171 = smul.addr %s170, 4
      %s172 = scalar_lea.vmem %s3, %s171
      %s173 = smul.u32 4, %s14
      %v175 = vld [vmem:[%s166] sm:$0xf]
      %v176 = vld [vmem:[%s166 + $0x4] sm:$0xf]
      %v177 = vld [vmem:[%s166 + $0x8] sm:$0xf]
      %v178 = vld [vmem:[%s166 + $0xc] sm:$0xf]
      %v179 = vld [vmem:[%s1] sm:$0xf]
      %v180 = vld [vmem:[%s1 + $0x4] sm:$0xf]
      %v181 = vld [vmem:[%s1 + $0x8] sm:$0xf]
      %v182 = vld [vmem:[%s1 + $0xc] sm:$0xf]
      %v183 = vld [vmem:[%s1 + $0x10] sm:$0xf]
      %v184 = vld [vmem:[%s1 + $0x14] sm:$0xf]
      %v185 = vld [vmem:[%s2] sm:$0xff]
      %v186 = vld [vmem:[%s2 + $0x8] sm:$0xff]
      %v187 = vld [vmem:[%s2 + $0x10] sm:$0xff]
      %v188 = vld [vmem:[%s2 + $0x18] sm:$0xff]
      %v193 = vunpack.c.l.b16 %v175
      %v194 = vunpack.c.l.b16 %v176
      %v195 = vunpack.c.l.b16 %v177
      %v196 = vunpack.c.l.b16 %v178
      %v197 = vpack.c.b16 %v194, %v193
      %v198 = vpack.c.b16 %v196, %v195
      %v205 = vunpack.c.l.b16 %v179
      %v206 = vunpack.c.l.b16 %v180
      %v207 = vunpack.c.l.b16 %v181
      %v208 = vunpack.c.l.b16 %v182
      %v209 = vunpack.c.l.b16 %v183
      %v210 = vunpack.c.l.b16 %v184
      %v211 = vpack.c.b16 %v206, %v205
      %v212 = vpack.c.b16 %v208, %v207
      %v213 = vpack.c.b16 %v210, %v209
      %vm217 = vcmask 392192
      %v219 = vsel %vm217, %v197, 0
      %v222 = vsel %vm217, %v198, 0
      %224 = vmatprep.subr.bf16.mxu0 0
      %225 = vmatpush1.bf16.msra.mxu0 %v211
      %226 = vmatprep.subr.bf16.mxu0 0
      %227 = vmatpush1.bf16.msra.mxu0 %v212
      %228 = vmatprep.subr.bf16.mxu0 0
      %229 = vmatpush1.bf16.msra.mxu0 %v213
      %230 = vmatprep.subr.bf16.mxu0 0
      %231 = vmatpush1.bf16.msra.mxu0 0
      %232 = vmatprep.subr.bf16.mxu0 0
      %233 = vmatpush1.bf16.msra.mxu0 0
      %234 = vmatprep.subr.bf16.mxu0 0
      %235 = vmatpush1.bf16.msra.mxu0 0
      %236 = vmatprep.subr.bf16.mxu0 0
      %237 = vmatpush1.bf16.msra.mxu0 0
      %238 = vmatprep.subr.bf16.mxu0 0
      %239 = vmatpush1.bf16.msra.mxu0 0
      %240 = vmatprep.subr.bf16.mxu0 0
      %241 = vmatpush1.bf16.msra.mxu0 0
      %242 = vmatprep.subr.bf16.mxu0 0
      %243 = vmatpush1.bf16.msra.mxu0 0
      %244 = vmatprep.subr.bf16.mxu0 0
      %245 = vmatpush1.bf16.msra.mxu0 0
      %246 = vmatprep.subr.bf16.mxu0 0
      %247 = vmatpush1.bf16.msra.mxu0 0
      %248 = vmatprep.subr.bf16.mxu0 0
      %249 = vmatpush1.bf16.msra.mxu0 0
      %250 = vmatprep.subr.bf16.mxu0 0
      %251 = vmatpush1.bf16.msra.mxu0 0
      %252 = vmatprep.subr.bf16.mxu0 0
      %253 = vmatpush1.bf16.msra.mxu0 0
      %254 = vmatprep.subr.bf16.mxu0 0
      %255 = vmatpush1.bf16.msra.mxu0 0
      %256 = vmatprep.mubr.bf16.mxu0 0
      %257 = vmatmul.mubr.bf16.gmra.mrb[0].mxu0 %v219
      %v258 = vpop.f32.mrb[0].mxu0
      %v259 = vadd.f32 %v185, %v258
      %v260 = vpop.f32.mrb[0].mxu0
      %v261 = vpop.f32.mrb[0].mxu0
      %v262 = vadd.f32 %v186, %v261
      %v263 = vpop.f32.mrb[0].mxu0
      %264 = vmatprep.mubr.bf16.mxu0 0
      %265 = vmatmul.mubr.bf16.gmra.mrb[0].mxu0 %v222
      %v266 = vpop.f32.mrb[0].mxu0
      %v267 = vadd.f32 %v187, %v266
      %v268 = vpop.f32.mrb[0].mxu0
      %v269 = vpop.f32.mrb[0].mxu0
      %v270 = vadd.f32 %v188, %v269
      %v271 = vpop.f32.mrb[0].mxu0
      %272 = vdwg.mxu0
      %v273 = vpack.c.bf16 %v262, %v259
      %v274 = vpack.c.bf16 %v270, %v267
      %v277 = vunpack.c.l.b16 %v273
      %v278 = vunpack.c.h.b16 %v273
      %v279 = vunpack.c.l.b16 %v274
      %v280 = vunpack.c.h.b16 %v274
      %v281 = vpack.c.b16 %v277, %v277
      %v282 = vpack.c.b16 %v278, %v278
      %v283 = vpack.c.b16 %v279, %v279
      %v284 = vpack.c.b16 %v280, %v280
      %vm289 = vcmask 257024
      %290 = vst.msk [vmem:[%s172] sm:$0xf] %vm289, %v281
      %291 = vst.msk [vmem:[%s172 + $0x4] sm:$0xf] %vm289, %v282
      %292 = vst.msk [vmem:[%s172 + $0x8] sm:$0xf] %vm289, %v283
      %293 = vst.msk [vmem:[%s172 + $0xc] sm:$0xf] %vm289, %v284
      %s294 = smul.u32 4, %s14
      %p295 = scmp.lt.s32.totalorder %s294, 7
      %s296 = scalar_select %p295, %s294, 7
      %s297 = smul.addr %s296, 4
      %s298 = scalar_lea.vmem %s3, %s297
      // Predicated region
      $region33: #{embed_forward.1} parent=31 // pred_check
        %p299 = pneg %p100
      $region34: #{embed_forward.1} parent=31 // pred_check_branch
        %301 = sbr.rel (%p299) target = $region36
      $region35: #{embed_forward.1} parent=31 // pred_region
        %s302 = smul.u32 4, %s14
      $region36: #{embed_forward.1} parent=31 // pred_fallthru
        _
    $region32: #{embed_forward.1} parent=5 // pred_fallthru
      _
    %p303 = scmp.le.s32.totalorder 2, %s9
    // Predicated region
    $region37: #{embed_forward.1} parent=5 // pred_check
      %p304 = pneg %p303
    $region38: #{embed_forward.1} parent=5 // pred_check_branch
      %306 = sbr.rel (%p304) target = $region40
    $region39: #{embed_forward.1} parent=5 // pred_region
      %s307 = ssub.s32 %s9, 2
      // Predicated region
      $region41: #{embed_forward.1} parent=39 // pred_check
        %p308 = pneg %p106
      $region42: #{embed_forward.1} parent=39 // pred_check_branch
        %310 = sbr.rel (%p308) target = $region44
      $region43: #{embed_forward.1} parent=39 // pred_region
        %s311 = smul.u32 4, %s15
        %p312 = scmp.lt.s32.totalorder %s311, 7
        %s313 = scalar_select %p312, %s311, 7
        %s314 = smul.addr %s313, 4
        %s315 = scalar_lea.vmem %s3, %s314
      $region44: #{embed_forward.1} parent=39 // pred_fallthru
        _
    $region40: #{embed_forward.1} parent=5 // pred_fallthru
      _
  $region6: #{embed_forward.1} parent=0 // loop_footer
    %s13 = sadd.s32 1, %s9
  $region7: #{embed_forward.1} parent=0 // loop_footer_branch
    %8 = sbr.rel target = $region3
  $region8: #{embed_forward.1} parent=0 // loop_exit
    _

</llo_original>
